<compile_context>
chip_gen: v5e
topology: v5e:2x2
jax: 0.10.0
libtpu: 0.0.40
codegen_flags: <defaults>
</compile_context>

<pallas_src>
import jax
import jax.numpy as jnp
from jax import lax
from jax.experimental import pallas as pl
from jax.experimental.pallas import tpu as pltpu

LN_EPS = 1e-5
INV_SQRT2 = 0.7071067811865475


def _round_up(x, m):
    return (x + m - 1) // m * m


def _device_params():
    """Per-generation knobs: (vmem_budget_bytes, is_v7x, is_v5e)."""
    kind = ""
    try:
        kind = jax.devices()[0].device_kind.lower()
    except Exception:
        pass
    is_v7 = "v7" in kind
    is_v5e = ("v5e" in kind) or ("v5 lite" in kind) or ("v5litepod" in kind)
    phys = None
    try:
        phys = int(pltpu.get_tpu_info().vmem_capacity_bytes)
    except Exception:
        phys = None
    if phys is None or phys <= 0:
        phys = (64 << 20) if is_v7 else (128 << 20)
    # Leave DMA-descriptor / compiler-scratch headroom:
    # ~102 MiB on 128 MiB parts (v5e/v6e), ~51 MiB on v7x's 64 MiB.
    budget = min(int(phys * 0.8), phys - (12 << 20))
    budget = max(budget, 32 << 20)
    return budget, is_v7, is_v5e


def prepare_feed_forward_params(gamma, beta, w1, b1, w2, b2, *,
                                compute_dtype=jnp.bfloat16, tk=None):
    """One-time padding / casting of the FeedForward parameters.

    Hoisted out of the per-call path so the only HBM traffic per forward pass
    is the activations plus the (already padded, already compute-dtype)
    weights streamed by the kernel itself.

    gamma, beta: (D,)   LayerNorm affine
    w1: (D, H), b1: (H,)   first Linear  (stored as (in, out))
    w2: (H, D), b2: (D,)   second Linear
    """
    D, H = w1.shape
    cdt = jnp.dtype(compute_dtype)
    _, is_v7, _ = _device_params()
    if tk is None:
        tk = 512 if is_v7 else 1024          # v7x: 64 MiB VMEM -> smaller chunks
    tk = min(_round_up(tk, 128), _round_up(H, 128))
    Dp = _round_up(D, 128)
    Hp = _round_up(H, tk)

    return dict(
        D=D, H=H, Dp=Dp, Hp=Hp, tk=tk, cdt=cdt,
        gamma=jnp.pad(gamma.astype(jnp.float32), (0, Dp - D)).reshape(1, Dp),
        beta=jnp.pad(beta.astype(jnp.float32), (0, Dp - D)).reshape(1, Dp),
        w1=jnp.pad(w1.astype(cdt), ((0, Dp - D), (0, Hp - H))),
        b1=jnp.pad(b1.astype(jnp.float32), (0, Hp - H)).reshape(1, Hp),
        w2=jnp.pad(w2.astype(cdt), ((0, Hp - H), (0, Dp - D))),
        b2=jnp.pad(b2.astype(jnp.float32), (0, Dp - D)).reshape(1, Dp),
    )


def feed_forward(x, params):
    """Forward pass of FeedForward: LayerNorm -> Linear -> GELU -> Linear.

    x: (B, S, D);  params: output of `prepare_feed_forward_params`.
    """
    B, S, D = x.shape
    assert D == params["D"], "x feature dim does not match prepared params"
    Dp, Hp, tk, cdt = params["Dp"], params["Hp"], params["tk"], params["cdt"]
    H = params["H"]

    budget, is_v7, is_v5e = _device_params()
    w_bufs = 3 if is_v5e else 2              # Buffered(3) weight pipelining on v5e

    M = B * S
    out_dtype = x.dtype
    x_item = cdt.itemsize                    # x streamed in the compute dtype
    out_item = jnp.dtype(out_dtype).itemsize

    # ---- tile selection against the per-generation VMEM budget ----
    tm_cap = _round_up(M, 8)
    if is_v7 and M >= 512:
        # Keep >= 2 row tiles so both v7x TensorCores get work.
        tm_cap = min(tm_cap, _round_up((M + 1) // 2, 8))
    tm = min(1024, tm_cap)
    tk_eff = tk

    def _fits(tm_, tk_):
        return (2 * tm_ * Dp * x_item                 # x double buffer
                + 2 * tm_ * Dp * out_item             # output double buffer
                + w_bufs * Dp * tk_ * cdt.itemsize    # W1 buffers
                + w_bufs * tk_ * Dp * cdt.itemsize    # W2 buffers
                + tm_ * Dp * cdt.itemsize             # xn scratch
                + tm_ * Dp * 4                        # f32 accumulator
                + 8 * (3 * Dp + tk_) * 4              # gamma/beta/b1/b2 buffers
                ) <= budget

    def _can_halve_tk(t):
        # Halving keeps tk a multiple of 128 and a divisor of Hp.
        return t % 256 == 0

    while not _fits(tm, tk_eff):
        if tk_eff > 512 and _can_halve_tk(tk_eff):
            tk_eff //= 2                              # shrink weights first, keep big tm
        elif tm > 128:
            tm = _round_up(tm // 2, 8)
        elif _can_halve_tk(tk_eff):
            tk_eff //= 2
        elif tm > 8:
            tm = _round_up(tm // 2, 8)
        else:
            break

    Mp = _round_up(M, tm)
    nk = Hp // tk_eff
    n_row_tiles = Mp // tm

    # ---- per-call activation staging (weights were prepared once, outside) ----
    x2 = jnp.pad(x.reshape(M, D).astype(cdt), ((0, Mp - M), (0, Dp - D)))

    inv_d = 1.0 / D
    lane_pad = Dp != D

    def kernel(x_ref, g_ref, be_ref, b2_ref, w1_ref, b1_ref, w2_ref,
               o_ref, xn_ref, acc_ref):
        k = pl.program_id(1)

        # LayerNorm once per row tile (k == 0); stash normalized rows + zero acc.
        @pl.when(k == 0)
        def _():
            xf = x_ref[...].astype(jnp.float32)
            mean = jnp.sum(xf, axis=-1, keepdims=True) * inv_d
            cent = xf - mean
            if lane_pad:
                lane = lax.broadcasted_iota(jnp.int32, (1, Dp), 1)
                cent = jnp.where(lane < D, cent, 0.0)
            var = jnp.sum(cent * cent, axis=-1, keepdims=True) * inv_d
            xn = cent * lax.rsqrt(var + LN_EPS)
            xn = xn * g_ref[...] + be_ref[...]
            xn_ref[...] = xn.astype(xn_ref.dtype)
            acc_ref[...] = jnp.zeros_like(acc_ref)

        # One hidden chunk: (tm, Dp) @ (Dp, tk) -> GELU -> (tm, tk) @ (tk, Dp).
        h = jnp.dot(xn_ref[...], w1_ref[...],
                    preferred_element_type=jnp.float32) + b1_ref[...]
        # Exact (erf) GELU to match nn.GELU() default numerics.
        h = 0.5 * h * (1.0 + lax.erf(h * INV_SQRT2))
        acc_ref[...] += jnp.dot(h.astype(w2_ref.dtype), w2_ref[...],
                                preferred_element_type=jnp.float32)

        @pl.when(k == nk - 1)
        def _():
            o_ref[...] = (acc_ref[...] + b2_ref[...]).astype(o_ref.dtype)

    # Weight BlockSpecs; deeper pipelining on v5e (most HBM-latency-exposed gen).
    if is_v5e:
        try:
            w1_spec = pl.BlockSpec((Dp, tk_eff), lambda i, k: (0, k),
                                   pipeline_mode=pl.Buffered(3))
            w2_spec = pl.BlockSpec((tk_eff, Dp), lambda i, k: (k, 0),
                                   pipeline_mode=pl.Buffered(3))
        except TypeError:
            w1_spec = pl.BlockSpec((Dp, tk_eff), lambda i, k: (0, k))
            w2_spec = pl.BlockSpec((tk_eff, Dp), lambda i, k: (k, 0))
    else:
        w1_spec = pl.BlockSpec((Dp, tk_eff), lambda i, k: (0, k))
        w2_spec = pl.BlockSpec((tk_eff, Dp), lambda i, k: (k, 0))

    # Advisory cost for the XLA scheduler: weights are re-streamed per row tile.
    flops = 4 * Mp * Dp * Hp
    transcendentals = Mp * Hp
    bytes_accessed = int(
        Mp * Dp * x_item
        + Mp * Dp * out_item
        + n_row_tiles * (params["w1"].nbytes + params["w2"].nbytes)
        + n_row_tiles * (params["gamma"].nbytes + params["beta"].nbytes
                         + params["b1"].nbytes + params["b2"].nbytes))
    cost = pl.CostEstimate(flops=flops, transcendentals=transcendentals,
                           bytes_accessed=bytes_accessed)

    out = pl.pallas_call(
        kernel,
        out_shape=jax.ShapeDtypeStruct((Mp, Dp), out_dtype),
        grid_spec=pltpu.PrefetchScalarGridSpec(
            num_scalar_prefetch=0,
            grid=(n_row_tiles, nk),
            in_specs=[
                pl.BlockSpec((tm, Dp), lambda i, k: (i, 0)),   # x rows
                pl.BlockSpec((1, Dp), lambda i, k: (0, 0)),    # gamma
                pl.BlockSpec((1, Dp), lambda i, k: (0, 0)),    # beta
                pl.BlockSpec((1, Dp), lambda i, k: (0, 0)),    # b2
                w1_spec,                                       # W1 chunk
                pl.BlockSpec((1, tk_eff), lambda i, k: (0, k)),  # b1 chunk
                w2_spec,                                       # W2 chunk
            ],
            out_specs=pl.BlockSpec((tm, Dp), lambda i, k: (i, 0)),
            scratch_shapes=[
                pltpu.VMEM((tm, Dp), cdt),          # normalized rows (MXU dtype)
                pltpu.VMEM((tm, Dp), jnp.float32),  # f32 accumulator
            ],
        ),
        compiler_params=pltpu.CompilerParams(
            dimension_semantics=("parallel", "arbitrary"),
            vmem_limit_bytes=int(budget),
        ),
        cost_estimate=cost,
    )(x2, params["gamma"], params["beta"], params["b2"],
      params["w1"], params["b1"], params["w2"])

    return out[:M, :D].reshape(B, S, D)


def _reference(x, gamma, beta, w1, b1, w2, b2):
    mean = jnp.mean(x, axis=-1, keepdims=True)
    var = jnp.mean((x - mean) ** 2, axis=-1, keepdims=True)
    xn = (x - mean) / jnp.sqrt(var + LN_EPS) * gamma + beta
    h = xn @ w1 + b1
    h = 0.5 * h * (1.0 + lax.erf(h * INV_SQRT2))
    return h @ w2 + b2


if __name__ == "__main__":
    B, S, D, H = 2, 8, 32, 64   # dim=32, hidden_dim=64

    key = jax.random.PRNGKey(0)
    kx, k1, k2, k3, k4 = jax.random.split(key, 5)

    x = jax.random.normal(kx, (B, S, D), dtype=jnp.float32)

    # Deterministic synthetic parameters (shapes match nn.Module __init__).
    gamma = jnp.ones((D,), jnp.float32)
    beta = jnp.zeros((D,), jnp.float32)
    w1 = jax.random.normal(k1, (D, H), dtype=jnp.float32) * (1.0 / jnp.sqrt(D))
    b1 = jax.random.normal(k2, (H,), dtype=jnp.float32) * 0.01
    w2 = jax.random.normal(k3, (H, D), dtype=jnp.float32) * (1.0 / jnp.sqrt(H))
    b2 = jax.random.normal(k4, (D,), dtype=jnp.float32) * 0.01

    ref = _reference(x, gamma, beta, w1, b1, w2, b2)

    # Exact (f32 MXU operand) path — tight tolerance.
    params_f32 = prepare_feed_forward_params(gamma, beta, w1, b1, w2, b2,
                                             compute_dtype=jnp.float32)
    out_f32 = jax.block_until_ready(feed_forward(x, params_f32))
    assert out_f32.shape == (B, S, D)
    assert jnp.allclose(out_f32, ref, atol=1e-4, rtol=1e-4), "f32 path mismatch"

    # Default fast path: bf16 MXU operands, f32 LN/GELU/accumulation.
    params_bf16 = prepare_feed_forward_params(gamma, beta, w1, b1, w2, b2)
    out_bf16 = jax.block_until_ready(feed_forward(x, params_bf16))
    assert out_bf16.shape == (B, S, D)
    assert bool(jnp.all(jnp.isfinite(out_bf16)))
    assert jnp.allclose(out_bf16, ref, atol=1e-1, rtol=1e-1), "bf16 path mismatch"

    print("KERNEL_OK")
</pallas_src>

<mosaic_0001>
module attributes {stable_mosaic.version = 11 : i64} {
  func.func @kernel(%arg0: i32, %arg1: i32, %arg2: memref<16x128xf32, #tpu.memory_space<vmem>>, %arg3: memref<1x128xf32, #tpu.memory_space<vmem>>, %arg4: memref<1x128xf32, #tpu.memory_space<vmem>>, %arg5: memref<1x128xf32, #tpu.memory_space<vmem>>, %arg6: memref<128x128xf32, #tpu.memory_space<vmem>>, %arg7: memref<1x128xf32, #tpu.memory_space<vmem>>, %arg8: memref<128x128xf32, #tpu.memory_space<vmem>>, %arg9: memref<16x128xf32, #tpu.memory_space<vmem>>, %arg10: memref<16x128xf32, #tpu.memory_space<vmem>>, %arg11: memref<16x128xf32, #tpu.memory_space<vmem>>) attributes {dimension_semantics = [#tpu.dimension_semantics<parallel>, #tpu.dimension_semantics<arbitrary>], iteration_bounds = array<i64: 1, 1>, scalar_prefetch = 0 : i64, scratch_operands = 2 : i64, tpu.core_type = #tpu.core_type<tc>, window_params = [{transform_indices = @transform_0, window_bounds = array<i64: 16, 128>}, {pipeline_mode = #tpu.pipeline_mode<synchronous>, transform_indices = @transform_1, window_bounds = array<i64: 1, 128>}, {pipeline_mode = #tpu.pipeline_mode<synchronous>, transform_indices = @transform_2, window_bounds = array<i64: 1, 128>}, {pipeline_mode = #tpu.pipeline_mode<synchronous>, transform_indices = @transform_3, window_bounds = array<i64: 1, 128>}, {transform_indices = @transform_4, window_bounds = array<i64: 128, 128>}, {transform_indices = @transform_5, window_bounds = array<i64: 1, 128>}, {transform_indices = @transform_6, window_bounds = array<i64: 128, 128>}, {transform_indices = @transform_7, window_bounds = array<i64: 16, 128>}]} {
    %c0_i32 = arith.constant 0 : i32
    %0 = arith.cmpi eq, %arg1, %c0_i32 : i32
    %1 = arith.extui %0 : i1 to i32
    %c0_i32_0 = arith.constant 0 : i32
    %2 = arith.cmpi ne, %1, %c0_i32_0 : i32
    scf.if %2 {
      %c0_18 = arith.constant 0 : index
      %c0_19 = arith.constant 0 : index
      %25 = vector.load %arg2[%c0_18, %c0_19] : memref<16x128xf32, #tpu.memory_space<vmem>>, vector<16x128xf32>
      %cst_20 = arith.constant dense<0.000000e+00> : vector<16xf32>
      %26 = vector.multi_reduction <add>, %25, %cst_20 [1] : vector<16x128xf32> to vector<16xf32>
      %27 = vector.shape_cast %26 : vector<16xf32> to vector<16x1xf32>
      %cst_21 = arith.constant 3.125000e-02 : f32
      %28 = vector.broadcast %cst_21 : f32 to vector<16x1xf32>
      %29 = arith.mulf %27, %28 : vector<16x1xf32>
      %30 = vector.broadcast %29 : vector<16x1xf32> to vector<16x128xf32>
      %31 = arith.subf %25, %30 : vector<16x128xf32>
      %32 = tpu.iota {dimensions = array<i32: 1>} : vector<1x128xi32>
      %c32_i32 = arith.constant 32 : i32
      %33 = vector.broadcast %c32_i32 : i32 to vector<1x128xi32>
      %34 = arith.cmpi slt, %32, %33 : vector<1x128xi32>
      %cst_22 = arith.constant 0.000000e+00 : f32
      %35 = vector.shape_cast %34 : vector<1x128xi1> to vector<1x128xi1>
      %36 = vector.broadcast %35 : vector<1x128xi1> to vector<16x128xi1>
      %37 = vector.broadcast %cst_22 : f32 to vector<16x128xf32>
      %38 = arith.select %36, %31, %37 : vector<16x128xi1>, vector<16x128xf32>
      %39 = arith.mulf %38, %38 : vector<16x128xf32>
      %cst_23 = arith.constant dense<0.000000e+00> : vector<16xf32>
      %40 = vector.multi_reduction <add>, %39, %cst_23 [1] : vector<16x128xf32> to vector<16xf32>
      %41 = vector.shape_cast %40 : vector<16xf32> to vector<16x1xf32>
      %cst_24 = arith.constant 3.125000e-02 : f32
      %42 = vector.broadcast %cst_24 : f32 to vector<16x1xf32>
      %43 = arith.mulf %41, %42 : vector<16x1xf32>
      %cst_25 = arith.constant 9.99999974E-6 : f32
      %44 = vector.broadcast %cst_25 : f32 to vector<16x1xf32>
      %45 = arith.addf %43, %44 : vector<16x1xf32>
      %46 = math.rsqrt %45 : vector<16x1xf32>
      %47 = vector.broadcast %46 : vector<16x1xf32> to vector<16x128xf32>
      %48 = arith.mulf %38, %47 : vector<16x128xf32>
      %c0_26 = arith.constant 0 : index
      %c0_27 = arith.constant 0 : index
      %49 = vector.load %arg3[%c0_26, %c0_27] : memref<1x128xf32, #tpu.memory_space<vmem>>, vector<1x128xf32>
      %50 = vector.broadcast %49 : vector<1x128xf32> to vector<16x128xf32>
      %51 = arith.mulf %48, %50 : vector<16x128xf32>
      %c0_28 = arith.constant 0 : index
      %c0_29 = arith.constant 0 : index
      %52 = vector.load %arg4[%c0_28, %c0_29] : memref<1x128xf32, #tpu.memory_space<vmem>>, vector<1x128xf32>
      %53 = vector.broadcast %52 : vector<1x128xf32> to vector<16x128xf32>
      %54 = arith.addf %51, %53 : vector<16x128xf32>
      %c0_30 = arith.constant 0 : index
      %c0_31 = arith.constant 0 : index
      %55 = vector.load %arg10[%c0_30, %c0_31] : memref<16x128xf32, #tpu.memory_space<vmem>>, vector<16x128xf32>
      tpu.vector_store %arg10[%c0_30, %c0_31], %54 {strides = array<i32>} : memref<16x128xf32, #tpu.memory_space<vmem>>, vector<16x128xf32>,
      %cst_32 = arith.constant 0.000000e+00 : f32
      %56 = vector.broadcast %cst_32 : f32 to vector<16x128xf32>
      %c0_33 = arith.constant 0 : index
      %c0_34 = arith.constant 0 : index
      %57 = vector.load %arg11[%c0_33, %c0_34] : memref<16x128xf32, #tpu.memory_space<vmem>>, vector<16x128xf32>
      tpu.vector_store %arg11[%c0_33, %c0_34], %56 {strides = array<i32>} : memref<16x128xf32, #tpu.memory_space<vmem>>, vector<16x128xf32>,
    } else {
    }
    %c0 = arith.constant 0 : index
    %c0_1 = arith.constant 0 : index
    %3 = vector.load %arg10[%c0, %c0_1] : memref<16x128xf32, #tpu.memory_space<vmem>>, vector<16x128xf32>
    %c0_2 = arith.constant 0 : index
    %c0_3 = arith.constant 0 : index
    %4 = vector.load %arg6[%c0_2, %c0_3] : memref<128x128xf32, #tpu.memory_space<vmem>>, vector<128x128xf32>
    %cst = arith.constant dense<0.000000e+00> : vector<16x128xf32>
    %5 = tpu.matmul %3, %4, %cst {dimension_numbers = #tpu.dot_dimension_numbers<[1], [0], [0], [1], [0, 0, 1, 1], [], []>} : vector<16x128xf32>, vector<128x128xf32>, vector<16x128xf32> -> vector<16x128xf32>
    %c0_4 = arith.constant 0 : index
    %c0_5 = arith.constant 0 : index
    %6 = vector.load %arg7[%c0_4, %c0_5] : memref<1x128xf32, #tpu.memory_space<vmem>>, vector<1x128xf32>
    %7 = vector.broadcast %6 : vector<1x128xf32> to vector<16x128xf32>
    %8 = arith.addf %5, %7 : vector<16x128xf32>
    %cst_6 = arith.constant 5.000000e-01 : f32
    %9 = vector.broadcast %cst_6 : f32 to vector<16x128xf32>
    %10 = arith.mulf %9, %8 : vector<16x128xf32>
    %cst_7 = arith.constant 0.707106769 : f32
    %11 = vector.broadcast %cst_7 : f32 to vector<16x128xf32>
    %12 = arith.mulf %8, %11 : vector<16x128xf32>
    %13 = math.erf %12 : vector<16x128xf32>
    %cst_8 = arith.constant 1.000000e+00 : f32
    %14 = vector.broadcast %cst_8 : f32 to vector<16x128xf32>
    %15 = arith.addf %14, %13 : vector<16x128xf32>
    %16 = arith.mulf %10, %15 : vector<16x128xf32>
    %c0_9 = arith.constant 0 : index
    %c0_10 = arith.constant 0 : index
    %17 = vector.load %arg11[%c0_9, %c0_10] : memref<16x128xf32, #tpu.memory_space<vmem>>, vector<16x128xf32>
    %c0_11 = arith.constant 0 : index
    %c0_12 = arith.constant 0 : index
    %18 = vector.load %arg8[%c0_11, %c0_12] : memref<128x128xf32, #tpu.memory_space<vmem>>, vector<128x128xf32>
    %cst_13 = arith.constant dense<0.000000e+00> : vector<16x128xf32>
    %19 = tpu.matmul %16, %18, %cst_13 {dimension_numbers = #tpu.dot_dimension_numbers<[1], [0], [0], [1], [0, 0, 1, 1], [], []>} : vector<16x128xf32>, vector<128x128xf32>, vector<16x128xf32> -> vector<16x128xf32>
    %20 = arith.addf %17, %19 : vector<16x128xf32>
    %c0_14 = arith.constant 0 : index
    %c0_15 = arith.constant 0 : index
    %21 = vector.load %arg11[%c0_14, %c0_15] : memref<16x128xf32, #tpu.memory_space<vmem>>, vector<16x128xf32>
    tpu.vector_store %arg11[%c0_14, %c0_15], %20 {strides = array<i32>} : memref<16x128xf32, #tpu.memory_space<vmem>>, vector<16x128xf32>,
    %c0_i32_16 = arith.constant 0 : i32
    %22 = arith.cmpi eq, %arg1, %c0_i32_16 : i32
    %23 = arith.extui %22 : i1 to i32
    %c0_i32_17 = arith.constant 0 : i32
    %24 = arith.cmpi ne, %23, %c0_i32_17 : i32
    scf.if %24 {
      %c0_18 = arith.constant 0 : index
      %c0_19 = arith.constant 0 : index
      %25 = vector.load %arg11[%c0_18, %c0_19] : memref<16x128xf32, #tpu.memory_space<vmem>>, vector<16x128xf32>
      %c0_20 = arith.constant 0 : index
      %c0_21 = arith.constant 0 : index
      %26 = vector.load %arg5[%c0_20, %c0_21] : memref<1x128xf32, #tpu.memory_space<vmem>>, vector<1x128xf32>
      %27 = vector.broadcast %26 : vector<1x128xf32> to vector<16x128xf32>
      %28 = arith.addf %25, %27 : vector<16x128xf32>
      %c0_22 = arith.constant 0 : index
      %c0_23 = arith.constant 0 : index
      %29 = vector.load %arg9[%c0_22, %c0_23] : memref<16x128xf32, #tpu.memory_space<vmem>>, vector<16x128xf32>
      tpu.vector_store %arg9[%c0_22, %c0_23], %28 {strides = array<i32>} : memref<16x128xf32, #tpu.memory_space<vmem>>, vector<16x128xf32>,
    } else {
    }
    return
  }
  func.func @transform_0(%arg0: i32, %arg1: i32) -> (i32, i32) {
    %c0_i32 = arith.constant 0 : i32
    %c0_i32_0 = arith.constant 0 : i32
    return %arg0, %c0_i32 : i32, i32
  }
  func.func @transform_1(%arg0: i32, %arg1: i32) -> (i32, i32) {
    %c0_i32 = arith.constant 0 : i32
    %c0_i32_0 = arith.constant 0 : i32
    %c0_i32_1 = arith.constant 0 : i32
    return %c0_i32, %c0_i32_0 : i32, i32
  }
  func.func @transform_2(%arg0: i32, %arg1: i32) -> (i32, i32) {
    %c0_i32 = arith.constant 0 : i32
    %c0_i32_0 = arith.constant 0 : i32
    %c0_i32_1 = arith.constant 0 : i32
    return %c0_i32, %c0_i32_0 : i32, i32
  }
  func.func @transform_3(%arg0: i32, %arg1: i32) -> (i32, i32) {
    %c0_i32 = arith.constant 0 : i32
    %c0_i32_0 = arith.constant 0 : i32
    %c0_i32_1 = arith.constant 0 : i32
    return %c0_i32, %c0_i32_0 : i32, i32
  }
  func.func @transform_4(%arg0: i32, %arg1: i32) -> (i32, i32) {
    %c0_i32 = arith.constant 0 : i32
    %c0_i32_0 = arith.constant 0 : i32
    return %c0_i32, %arg1 : i32, i32
  }
  func.func @transform_5(%arg0: i32, %arg1: i32) -> (i32, i32) {
    %c0_i32 = arith.constant 0 : i32
    %c0_i32_0 = arith.constant 0 : i32
    return %c0_i32, %arg1 : i32, i32
  }
  func.func @transform_6(%arg0: i32, %arg1: i32) -> (i32, i32) {
    %c0_i32 = arith.constant 0 : i32
    %c0_i32_0 = arith.constant 0 : i32
    return %arg1, %c0_i32 : i32, i32
  }
  func.func @transform_7(%arg0: i32, %arg1: i32) -> (i32, i32) {
    %c0_i32 = arith.constant 0 : i32
    %c0_i32_0 = arith.constant 0 : i32
    return %arg0, %c0_i32 : i32, i32
  }
}

</mosaic_0001>

<llo_original>
// kernel: tpu_custom_call.1
$region0: #{tpu_custom_call.1}
  #allocation0 [shape = 'u32[]', space=smem, size = 0x4, offset = 0x4, fixed_abs, tag = 'smem constant byte address 0x4 - core index']
  #allocation1 [shape = 'u32[72,128]{1,0:T(1,128)}', space=vmem, size = 0x9000, scoped, tag = 'internal scratch']
  #allocation2 [shape = 'f32[16,128]{1,0:T(8,128)}', space=vmem, size = 0x2000, scoped, tag = 'scratch operand']
  #allocation3 [shape = 'f32[16,128]{1,0:T(8,128)}', space=vmem, size = 0x2000, scoped, tag = 'scratch operand']
  %s0 = inlined_call_operand.hbm [shape: f32[16,128], index: 0, kind: input, shape index: {}]
  %s1 = inlined_call_operand.hbm [shape: f32[1,128], index: 1, kind: input, shape index: {}]
  %s2 = inlined_call_operand.vmem [shape: f32[1,128], index: 2, kind: input, shape index: {}]
  %s3 = inlined_call_operand.vmem [shape: f32[1,128], index: 3, kind: input, shape index: {}]
  %s4 = inlined_call_operand.hbm [shape: f32[128,128], index: 4, kind: input, shape index: {}]
  %s5 = inlined_call_operand.vmem [shape: f32[1,128], index: 5, kind: input, shape index: {}]
  %s6 = inlined_call_operand.hbm [shape: f32[128,128], index: 6, kind: input, shape index: {}]
  %s7 = inlined_call_operand.hbm [shape: f32[16,128], index: 7, kind: output, shape index: {}]
  %s8 = sld [smem:[#allocation0]]
  $region62: #{tpu_custom_call.1} parent=0
    _
  %s10 = ssub.s32 1, %s8
  %s11 = scalar_select 0, %s10, %s8
  $region1: #{tpu_custom_call.1} parent=0
    #allocation4 [shape = 'u8[8192]{0}', space=vmem, size = 0x2000, scoped, tag = 'input window, operand 0, single buffered']
    #allocation5 [shape = 's32[1]{0}', space=sflag, size = 0x4, scoped, tag = 'scoped memory for tpu_custom_call.1']
    #allocation6 [shape = 's32[1]{0}', space=sflag, size = 0x4, scoped, tag = 'scoped memory for tpu_custom_call.1']
    #allocation7 [shape = 'u8[512]{0}', space=vmem, size = 0x400, scoped, tag = 'input window, operand 1, single buffered']
    #allocation8 [shape = 's32[1]{0}', space=sflag, size = 0x4, scoped, tag = 'scoped memory for tpu_custom_call.1']
    #allocation9 [shape = 'u8[65536]{0}', space=vmem, size = 0x10000, scoped, tag = 'input window, operand 4, single buffered']
    #allocation10 [shape = 'u8[65536]{0}', space=vmem, size = 0x10000, scoped, tag = 'input window, operand 6, single buffered']
    #allocation11 [shape = 's32[1]{0}', space=sflag, size = 0x4, scoped, tag = 'scoped memory for tpu_custom_call.1']
    #allocation12 [shape = 'u8[8192]{0}', space=vmem, size = 0x2000, scoped, tag = 'output window, operand 0, single buffered']
    %12 = vsyncpa [#allocation5], 0
    %13 = vsyncpa [#allocation8], 0
    %14 = vsyncpa [#allocation11], 0
    %15 = vsyncpa [#allocation6], 0
    // Predicated region
    $region2: #{tpu_custom_call.1} parent=1 // pred_check
      _
    $region3: #{tpu_custom_call.1} parent=1 // pred_check_branch
      %17 = sbr.rel (0) target = $region5
    $region4: #{tpu_custom_call.1} parent=1 // pred_region
      %19 = vsyncadd [#allocation5], 0
      %s20 = sshll.u32 %s0, 4
      %s21 = int_to_ptr.hbm [resolvable:$true] %s20
      %s22 = sshll.u32 [#allocation4], 4
      %s23 = int_to_ptr.vmem [resolvable:$true] %s22
      %28 = dma.hbm_to_vmem [thread:$0]  %s21, 256, %s23, [#allocation5], 128, 128, 8
    $region5: #{tpu_custom_call.1} parent=1 // pred_fallthru
      _
    // Predicated region
    $region6: #{tpu_custom_call.1} parent=1 // pred_check
      _
    $region7: #{tpu_custom_call.1} parent=1 // pred_check_branch
      %30 = sbr.rel (0) target = $region9
    $region8: #{tpu_custom_call.1} parent=1 // pred_region
      %32 = vsyncadd [#allocation8], 0
      %s34 = sshll.u32 %s1, 4
      %s35 = int_to_ptr.hbm [resolvable:$true] %s34
      %s36 = sshll.u32 [#allocation7], 4
      %s37 = int_to_ptr.vmem [resolvable:$true] %s36
      %39 = dma.hbm_to_vmem [thread:$0]  %s35, 16, %s37, [#allocation8]
    $region9: #{tpu_custom_call.1} parent=1 // pred_fallthru
      _
    // Predicated region
    $region10: #{tpu_custom_call.1} parent=1 // pred_check
      _
    $region11: #{tpu_custom_call.1} parent=1 // pred_check_branch
      %41 = sbr.rel (0) target = $region13
    $region12: #{tpu_custom_call.1} parent=1 // pred_region
      _
    $region13: #{tpu_custom_call.1} parent=1 // pred_fallthru
      _
    // Predicated region
    $region14: #{tpu_custom_call.1} parent=1 // pred_check
      _
    $region15: #{tpu_custom_call.1} parent=1 // pred_check_branch
      %43 = sbr.rel (0) target = $region17
    $region16: #{tpu_custom_call.1} parent=1 // pred_region
      _
    $region17: #{tpu_custom_call.1} parent=1 // pred_fallthru
      _
    // Predicated region
    $region18: #{tpu_custom_call.1} parent=1 // pred_check
      _
    $region19: #{tpu_custom_call.1} parent=1 // pred_check_branch
      %45 = sbr.rel (0) target = $region21
    $region20: #{tpu_custom_call.1} parent=1 // pred_region
      %47 = vsyncadd [#allocation8], 0
      %s48 = sshll.u32 %s4, 4
      %s49 = int_to_ptr.hbm [resolvable:$true] %s48
      %s50 = sshll.u32 [#allocation9], 4
      %s51 = int_to_ptr.vmem [resolvable:$true] %s50
      %56 = dma.hbm_to_vmem [thread:$0]  %s49, 2048, %s51, [#allocation8], 128, 128, 8
    $region21: #{tpu_custom_call.1} parent=1 // pred_fallthru
      _
    // Predicated region
    $region22: #{tpu_custom_call.1} parent=1 // pred_check
      _
    $region23: #{tpu_custom_call.1} parent=1 // pred_check_branch
      %58 = sbr.rel (0) target = $region25
    $region24: #{tpu_custom_call.1} parent=1 // pred_region
      _
    $region25: #{tpu_custom_call.1} parent=1 // pred_fallthru
      _
    // Predicated region
    $region26: #{tpu_custom_call.1} parent=1 // pred_check
      _
    $region27: #{tpu_custom_call.1} parent=1 // pred_check_branch
      %60 = sbr.rel (0) target = $region29
    $region28: #{tpu_custom_call.1} parent=1 // pred_region
      %62 = vsyncadd [#allocation11], 0
      %s63 = sshll.u32 %s6, 4
      %s64 = int_to_ptr.hbm [resolvable:$true] %s63
      %s65 = sshll.u32 [#allocation10], 4
      %s66 = int_to_ptr.vmem [resolvable:$true] %s65
      %71 = dma.hbm_to_vmem [thread:$0]  %s64, 2048, %s66, [#allocation11], 128, 128, 8
    $region29: #{tpu_custom_call.1} parent=1 // pred_fallthru
      _
    // Predicated region
    $region30: #{tpu_custom_call.1} parent=1 // pred_check
      _
    $region31: #{tpu_custom_call.1} parent=1 // pred_check_branch
      %73 = sbr.rel (0) target = $region33
    $region32: #{tpu_custom_call.1} parent=1 // pred_region
      %75 = dma.done [#allocation5], 256
    $region33: #{tpu_custom_call.1} parent=1 // pred_fallthru
      _
    // Predicated region
    $region34: #{tpu_custom_call.1} parent=1 // pred_check
      _
    $region35: #{tpu_custom_call.1} parent=1 // pred_check_branch
      %77 = sbr.rel (0) target = $region37
    $region36: #{tpu_custom_call.1} parent=1 // pred_region
      %79 = dma.done [#allocation8], 16
    $region37: #{tpu_custom_call.1} parent=1 // pred_fallthru
      _
    // Predicated region
    $region38: #{tpu_custom_call.1} parent=1 // pred_check
      _
    $region39: #{tpu_custom_call.1} parent=1 // pred_check_branch
      %81 = sbr.rel (0) target = $region41
    $region40: #{tpu_custom_call.1} parent=1 // pred_region
      %83 = dma.done [#allocation8], 2048
    $region41: #{tpu_custom_call.1} parent=1 // pred_fallthru
      _
    // Predicated region
    $region42: #{tpu_custom_call.1} parent=1 // pred_check
      _
    $region43: #{tpu_custom_call.1} parent=1 // pred_check_branch
      %85 = sbr.rel (0) target = $region45
    $region44: #{tpu_custom_call.1} parent=1 // pred_region
      %87 = dma.done [#allocation11], 2048
    $region45: #{tpu_custom_call.1} parent=1 // pred_fallthru
      _
    %p88 = scmp.eq.s32.totalorder 0, 0
    // Predicated region
    $region46: #{tpu_custom_call.1} parent=1 // pred_check
      %p89 = pneg %p88
    $region47: #{tpu_custom_call.1} parent=1 // pred_check_branch
      %91 = sbr.rel (%p89) target = $region49
    $region48: #{tpu_custom_call.1} parent=1 // pred_region
      %v92 = vld [vmem:[#allocation4] sm:$0xff]
      %v93 = vld [vmem:[#allocation4 + $0x8] sm:$0xff]
      %94 = vadd.xlane.f32.xlu0 %v92
      %v95 = vpop.xlane.xlu0 %94
      %96 = vadd.xlane.f32.xlu0 %v93
      %v97 = vpop.xlane.xlu0 %96
      %v98 = vmul.f32 %v95, 0.03125
      %v99 = vmul.f32 %v97, 0.03125
      %v100 = vsub.f32 %v92, %v98
      %v101 = vsub.f32 %v93, %v99
      %v102 = vlaneseq
      %v103 = vand.u32 %v102, 127
      %vm104 = vcmp.lt.s32.totalorder %v103, 32
      %v105 = vsel %vm104, 1, 0
      %vm106 = vcmp.eq.s32.totalorder %v105, 1
      %v107 = vsel %vm106, %v100, 0.0
      %v108 = vsel %vm106, %v101, 0.0
      %v109 = vmul.f32 %v107, %v107
      %v110 = vmul.f32 %v108, %v108
      %111 = vadd.xlane.f32.xlu0 %v109
      %v112 = vpop.xlane.xlu0 %111
      %113 = vadd.xlane.f32.xlu0 %v110
      %v114 = vpop.xlane.xlu0 %113
      %v115 = vmul.f32 %v112, 0.03125
      %v116 = vmul.f32 %v114, 0.03125
      %v117 = vadd.f32 %v115, 1e-05
      %v118 = vadd.f32 %v116, 1e-05
      %v119 = vrsqrt.pop %v117
      %v120 = vmul.f32 %v119, %v117
      %v121 = vmul.f32 %v120, %v119
      %v122 = vmul.f32 0.5, %v121
      %v123 = vsub.f32 1.5, %v122
      %v124 = vmul.f32 %v119, %v123
      %vm125 = vweird.f32 %v117
      %vm126 = vweird.f32 %v119
      %vm127 = vmor %vm125, %vm126
      %v128 = vsel %vm127, %v119, %v124
      %v129 = vrsqrt.pop %v118
      %v130 = vmul.f32 %v129, %v118
      %v131 = vmul.f32 %v130, %v129
      %v132 = vmul.f32 0.5, %v131
      %v133 = vsub.f32 1.5, %v132
      %v134 = vmul.f32 %v129, %v133
      %vm135 = vweird.f32 %v118
      %vm136 = vweird.f32 %v129
      %vm137 = vmor %vm135, %vm136
      %v138 = vsel %vm137, %v129, %v134
      %v139 = vmul.f32 %v107, %v128
      %v140 = vmul.f32 %v108, %v138
      %v141 = vld [vmem:[#allocation7] sm:$0x1]
      %v143 = vperm.slane %v141, 0
      %v145 = vmul.f32 %v139, %v143
      %v146 = vmul.f32 %v140, %v143
      %v147 = vld [vmem:[%s2] sm:$0x1]
      %v149 = vperm.slane %v147, 0
      %v151 = vadd.f32 %v145, %v149
      %v152 = vadd.f32 %v146, %v149
      %153 = vst [vmem:[#allocation2] sm:$0xff] %v151
      %154 = vst [vmem:[#allocation2 + $0x8] sm:$0xff] %v152
      %155 = vst [vmem:[#allocation3] sm:$0xff] 0.0
      %156 = vst [vmem:[#allocation3 + $0x8] sm:$0xff] 0.0
    $region49: #{tpu_custom_call.1} parent=1 // pred_fallthru
      _
    %v157 = vld [vmem:[#allocation2] sm:$0xff]
    %v158 = vld [vmem:[#allocation2 + $0x8] sm:$0xff]
    %v159 = vld [vmem:[#allocation9] sm:$0xff]
    %v160 = vld [vmem:[#allocation9 + $0x8] sm:$0xff]
    %v161 = vld [vmem:[#allocation9 + $0x10] sm:$0xff]
    %v162 = vld [vmem:[#allocation9 + $0x18] sm:$0xff]
    %v163 = vld [vmem:[#allocation9 + $0x20] sm:$0xff]
    %v164 = vld [vmem:[#allocation9 + $0x28] sm:$0xff]
    %v165 = vld [vmem:[#allocation9 + $0x30] sm:$0xff]
    %v166 = vld [vmem:[#allocation9 + $0x38] sm:$0xff]
    %v167 = vld [vmem:[#allocation9 + $0x40] sm:$0xff]
    %v168 = vld [vmem:[#allocation9 + $0x48] sm:$0xff]
    %v169 = vld [vmem:[#allocation9 + $0x50] sm:$0xff]
    %v170 = vld [vmem:[#allocation9 + $0x58] sm:$0xff]
    %v171 = vld [vmem:[#allocation9 + $0x60] sm:$0xff]
    %v172 = vld [vmem:[#allocation9 + $0x68] sm:$0xff]
    %v173 = vld [vmem:[#allocation9 + $0x70] sm:$0xff]
    %v174 = vld [vmem:[#allocation9 + $0x78] sm:$0xff]
    %v175 = vld [vmem:[%s5] sm:$0x1]
    %v177 = vperm.slane %v175, 0
    %179 = vmatpush.msra.mxu0 %v174
    %180 = vmatpush.msra.mxu0 %v173
    %181 = vmatpush.msra.mxu0 %v172
    %182 = vmatpush.msra.mxu0 %v171
    %183 = vmatpush.msra.mxu0 %v170
    %184 = vmatpush.msra.mxu0 %v169
    %185 = vmatpush.msra.mxu0 %v168
    %186 = vmatpush.msra.mxu0 %v167
    %187 = vmatpush.msra.mxu0 %v166
    %188 = vmatpush.msra.mxu0 %v165
    %189 = vmatpush.msra.mxu0 %v164
    %190 = vmatpush.msra.mxu0 %v163
    %191 = vmatpush.msra.mxu0 %v162
    %192 = vmatpush.msra.mxu0 %v161
    %193 = vmatpush.msra.mxu0 %v160
    %194 = vmatpush.msra.mxu0 %v159
    %195 = vmatmul.f32.gmra.mxu0 %v157
    %v196 = vpop.f32.mrf.mxu0
    %v197 = vadd.f32 %v177, %v196
    %198 = vmatmul.f32.gmra.mxu0 %v158
    %v199 = vpop.f32.mrf.mxu0
    %v200 = vadd.f32 %v177, %v199
    %201 = vdwg.mxu0
    %v202 = vmul.f32 %v197, 0.5
    %v203 = vmul.f32 %v200, 0.5
    %v204 = vmul.f32 %v197, 0.70710677
    %v205 = vmul.f32 %v200, 0.70710677
    %v206 = vmul.f32 %v204, %v204
    %v207 = vmin.f32 16.0, %v206
    %v208 = vmul.f32 %v207, 2.1237322e-06
    %v209 = vadd.f32 %v208, 0.00028619796
    %v210 = vmul.f32 %v207, %v209
    %v211 = vadd.f32 %v210, 0.0036580483
    %v212 = vmul.f32 %v207, %v211
    %v213 = vadd.f32 %v212, 0.05243302
    %v214 = vmul.f32 %v207, %v213
    %v215 = vadd.f32 %v214, 0.18741608
    %v216 = vmul.f32 %v207, %v215
    %v217 = vadd.f32 %v216, 1.1283791
    %v218 = vmul.f32 %v204, %v217
    %v219 = vmul.f32 %v207, 3.8918573e-05
    %v220 = vadd.f32 %v219, 0.001143296
    %v221 = vmul.f32 %v207, %v220
    %v222 = vadd.f32 %v221, 0.014752088
    %v223 = vmul.f32 %v207, %v222
    %v224 = vadd.f32 %v223, 0.112945676
    %v225 = vmul.f32 %v207, %v224
    %v226 = vadd.f32 %v225, 0.4994258
    %v227 = vmul.f32 %v207, %v226
    %v228 = vadd.f32 %v227, 1.0
    %v229 = vrcp.pop %v228
    %v230 = vmul.f32 %v228, %v229
    %v231 = vsub.f32 1.0, %v230
    %v232 = vmul.f32 %v229, %v231
    %v233 = vadd.f32 %v229, %v232
    %vm234 = vweird.f32 %v228
    %vm235 = vweird.f32 %v229
    %vm236 = vmor %vm234, %vm235
    %v237 = vsel %vm236, %v229, %v233
    %v238 = vand.u32 2147483647, %v228
    %vm239 = vcmp.eq.f32.partialorder %v238, 8.507059e+37
    %v240 = vand.u32 %v228, 2147483648
    %v241 = vor.u32 1.1754944e-38, %v240
    %v242 = vsel %vm239, %v241, %v237
    %v243 = vmul.f32 %v218, %v242
    %v244 = vmin.f32 %v243, 1.0
    %v245 = vmax.f32 %v244, -1.0
    %v246 = vmul.f32 %v205, %v205
    %v247 = vmin.f32 16.0, %v246
    %v248 = vmul.f32 %v247, 2.1237322e-06
    %v249 = vadd.f32 %v248, 0.00028619796
    %v250 = vmul.f32 %v247, %v249
    %v251 = vadd.f32 %v250, 0.0036580483
    %v252 = vmul.f32 %v247, %v251
    %v253 = vadd.f32 %v252, 0.05243302
    %v254 = vmul.f32 %v247, %v253
    %v255 = vadd.f32 %v254, 0.18741608
    %v256 = vmul.f32 %v247, %v255
    %v257 = vadd.f32 %v256, 1.1283791
    %v258 = vmul.f32 %v205, %v257
    %v259 = vmul.f32 %v247, 3.8918573e-05
    %v260 = vadd.f32 %v259, 0.001143296
    %v261 = vmul.f32 %v247, %v260
    %v262 = vadd.f32 %v261, 0.014752088
    %v263 = vmul.f32 %v247, %v262
    %v264 = vadd.f32 %v263, 0.112945676
    %v265 = vmul.f32 %v247, %v264
    %v266 = vadd.f32 %v265, 0.4994258
    %v267 = vmul.f32 %v247, %v266
    %v268 = vadd.f32 %v267, 1.0
    %v269 = vrcp.pop %v268
    %v270 = vmul.f32 %v268, %v269
    %v271 = vsub.f32 1.0, %v270
    %v272 = vmul.f32 %v269, %v271
    %v273 = vadd.f32 %v269, %v272
    %vm274 = vweird.f32 %v268
    %vm275 = vweird.f32 %v269
    %vm276 = vmor %vm274, %vm275
    %v277 = vsel %vm276, %v269, %v273
    %v278 = vand.u32 2147483647, %v268
    %vm279 = vcmp.eq.f32.partialorder %v278, 8.507059e+37
    %v280 = vand.u32 %v268, 2147483648
    %v281 = vor.u32 1.1754944e-38, %v280
    %v282 = vsel %vm279, %v281, %v277
    %v283 = vmul.f32 %v258, %v282
    %v284 = vmin.f32 %v283, 1.0
    %v285 = vmax.f32 %v284, -1.0
    %v286 = vadd.f32 %v245, 1.0
    %v287 = vadd.f32 %v285, 1.0
    %v288 = vmul.f32 %v202, %v286
    %v289 = vmul.f32 %v203, %v287
    %v290 = vld [vmem:[#allocation3] sm:$0xff]
    %v291 = vld [vmem:[#allocation3 + $0x8] sm:$0xff]
    %v292 = vld [vmem:[#allocation10] sm:$0xff]
    %v293 = vld [vmem:[#allocation10 + $0x8] sm:$0xff]
    %v294 = vld [vmem:[#allocation10 + $0x10] sm:$0xff]
    %v295 = vld [vmem:[#allocation10 + $0x18] sm:$0xff]
    %v296 = vld [vmem:[#allocation10 + $0x20] sm:$0xff]
    %v297 = vld [vmem:[#allocation10 + $0x28] sm:$0xff]
    %v298 = vld [vmem:[#allocation10 + $0x30] sm:$0xff]
    %v299 = vld [vmem:[#allocation10 + $0x38] sm:$0xff]
    %v300 = vld [vmem:[#allocation10 + $0x40] sm:$0xff]
    %v301 = vld [vmem:[#allocation10 + $0x48] sm:$0xff]
    %v302 = vld [vmem:[#allocation10 + $0x50] sm:$0xff]
    %v303 = vld [vmem:[#allocation10 + $0x58] sm:$0xff]
    %v304 = vld [vmem:[#allocation10 + $0x60] sm:$0xff]
    %v305 = vld [vmem:[#allocation10 + $0x68] sm:$0xff]
    %v306 = vld [vmem:[#allocation10 + $0x70] sm:$0xff]
    %v307 = vld [vmem:[#allocation10 + $0x78] sm:$0xff]
    %308 = vmatpush.msra.mxu0 %v307
    %309 = vmatpush.msra.mxu0 %v306
    %310 = vmatpush.msra.mxu0 %v305
    %311 = vmatpush.msra.mxu0 %v304
    %312 = vmatpush.msra.mxu0 %v303
    %313 = vmatpush.msra.mxu0 %v302
    %314 = vmatpush.msra.mxu0 %v301
    %315 = vmatpush.msra.mxu0 %v300
    %316 = vmatpush.msra.mxu0 %v299
    %317 = vmatpush.msra.mxu0 %v298
    %318 = vmatpush.msra.mxu0 %v297
    %319 = vmatpush.msra.mxu0 %v296
    %320 = vmatpush.msra.mxu0 %v295
    %321 = vmatpush.msra.mxu0 %v294
    %322 = vmatpush.msra.mxu0 %v293
    %323 = vmatpush.msra.mxu0 %v292
    %324 = vmatmul.f32.gmra.mxu0 %v288
    %v325 = vpop.f32.mrf.mxu0
    %v326 = vadd.f32 0.0, %v325
    %327 = vmatmul.f32.gmra.mxu0 %v289
    %v328 = vpop.f32.mrf.mxu0
    %v329 = vadd.f32 0.0, %v328
    %330 = vdwg.mxu0
    %v331 = vadd.f32 %v290, %v326
    %v332 = vadd.f32 %v291, %v329
    %333 = vst [vmem:[#allocation3] sm:$0xff] %v331
    %334 = vst [vmem:[#allocation3 + $0x8] sm:$0xff] %v332
    // Predicated region
    $region50: #{tpu_custom_call.1} parent=1 // pred_check
      %p335 = pneg %p88
    $region51: #{tpu_custom_call.1} parent=1 // pred_check_branch
      %337 = sbr.rel (%p335) target = $region53
    $region52: #{tpu_custom_call.1} parent=1 // pred_region
      %v338 = vld [vmem:[#allocation3] sm:$0xff]
      %v339 = vld [vmem:[#allocation3 + $0x8] sm:$0xff]
      %v340 = vld [vmem:[%s3] sm:$0x1]
      %v342 = vperm.slane %v340, 0
      %v344 = vadd.f32 %v338, %v342
      %v345 = vadd.f32 %v339, %v342
      %346 = vst [vmem:[#allocation12] sm:$0xff] %v344
      %347 = vst [vmem:[#allocation12 + $0x8] sm:$0xff] %v345
    $region53: #{tpu_custom_call.1} parent=1 // pred_fallthru
      _
    // Predicated region
    $region54: #{tpu_custom_call.1} parent=1 // pred_check
      _
    $region55: #{tpu_custom_call.1} parent=1 // pred_check_branch
      %349 = sbr.rel (0) target = $region57
    $region56: #{tpu_custom_call.1} parent=1 // pred_region
      %351 = vsyncadd [#allocation6], 0
      %s352 = sshll.u32 [#allocation12], 4
      %s353 = int_to_ptr.vmem [resolvable:$true] %s352
      %s354 = sshll.u32 %s7, 4
      %s355 = int_to_ptr.hbm [resolvable:$true] %s354
      %360 = dma.vmem_to_hbm [thread:$0]  %s353, 256, %s355, [#allocation6], 128, 128, 8
    $region57: #{tpu_custom_call.1} parent=1 // pred_fallthru
      _
    // Predicated region
    $region58: #{tpu_custom_call.1} parent=1 // pred_check
      _
    $region59: #{tpu_custom_call.1} parent=1 // pred_check_branch
      %362 = sbr.rel (0) target = $region61
    $region60: #{tpu_custom_call.1} parent=1 // pred_region
      %364 = dma.done [#allocation6], 256
    $region61: #{tpu_custom_call.1} parent=1 // pred_fallthru
      _
    %365 = vsyncpa [#allocation5], 1
    %366 = vsyncpa [#allocation8], 1
    %367 = vsyncpa [#allocation11], 1
    %368 = vsyncpa [#allocation6], 1

</llo_original>
